<compile_context>
chip_gen: v7x
topology: tpu7x:2x2x1
jax: 0.10.0
libtpu: 0.0.40
codegen_flags: <defaults>
</compile_context>

<pallas_src>
import functools

import numpy as np
import jax
import jax.numpy as jnp
from jax import lax
from jax.experimental import pallas as pl
from jax.experimental.pallas import tpu as pltpu

_LANES = 128


def _soft_margin_sum_kernel(x_ref, y_ref, out_ref, *, n_valid, tm):
    """One (tm, 128) tile -> (8, 128) slab of per-lane partial sums."""
    i = pl.program_id(0)
    x = x_ref[...]                                   # (tm, 128) f32
    y = y_ref[...]                                   # (tm, 128) f32
    z = -y * x
    # stable softplus(z) = max(z, 0) + log(1 + exp(-|z|))
    loss = jnp.maximum(z, 0.0) + jnp.log(1.0 + jnp.exp(-jnp.abs(z)))
    # Mask out padded elements (flat index >= n_valid), computed in-kernel.
    row = lax.broadcasted_iota(jnp.int32, (tm, _LANES), 0)
    lane = lax.broadcasted_iota(jnp.int32, (tm, _LANES), 1)
    flat = (i * tm + row) * _LANES + lane
    loss = jnp.where(flat < n_valid, loss, 0.0)
    partial = jnp.sum(loss, axis=0, keepdims=True)   # (1, 128) per-lane partials
    out_ref[...] = jnp.broadcast_to(partial, out_ref.shape)


def _soft_margin_elem_kernel(x_ref, y_ref, out_ref):
    """Per-element loss for reduction='none'."""
    x = x_ref[...]
    y = y_ref[...]
    z = -y * x
    out_ref[...] = jnp.maximum(z, 0.0) + jnp.log(1.0 + jnp.exp(-jnp.abs(z)))


def soft_margin_loss_pallas(x, y, reduction="mean"):
    """Pallas TPU implementation of F.soft_margin_loss(x, y, reduction)."""
    orig_shape = x.shape
    orig_dtype = x.dtype
    n = int(np.prod(orig_shape)) if len(orig_shape) > 0 else 1

    xf = jnp.ravel(x).astype(jnp.float32)
    yf = jnp.ravel(y).astype(jnp.float32)

    # Pack into (Rp, 128) lane-dense tiles; tm rows per grid step.
    R = (n + _LANES - 1) // _LANES
    R8 = ((R + 7) // 8) * 8
    tm = min(1024, R8)                                # 512 KiB/block max -> VMEM-safe
    Rp = ((R8 + tm - 1) // tm) * tm
    pad = Rp * _LANES - n
    xf = jnp.pad(xf, (0, pad))
    yf = jnp.pad(yf, (0, pad))
    x2 = xf.reshape(Rp, _LANES)
    y2 = yf.reshape(Rp, _LANES)
    G = Rp // tm

    tile_spec = pl.BlockSpec((tm, _LANES), lambda i: (i, 0))

    if reduction == "none":
        out = pl.pallas_call(
            _soft_margin_elem_kernel,
            out_shape=jax.ShapeDtypeStruct((Rp, _LANES), jnp.float32),
            grid_spec=pltpu.PrefetchScalarGridSpec(
                num_scalar_prefetch=0,
                grid=(G,),
                in_specs=[tile_spec, tile_spec],
                out_specs=pl.BlockSpec((tm, _LANES), lambda i: (i, 0)),
            ),
            compiler_params=pltpu.CompilerParams(
                dimension_semantics=("parallel",)),
        )(x2, y2)
        return out.reshape(-1)[:n].reshape(orig_shape).astype(orig_dtype)

    kernel = functools.partial(_soft_margin_sum_kernel, n_valid=n, tm=tm)
    out = pl.pallas_call(
        kernel,
        out_shape=jax.ShapeDtypeStruct((G * 8, _LANES), jnp.float32),
        grid_spec=pltpu.PrefetchScalarGridSpec(
            num_scalar_prefetch=0,
            grid=(G,),
            in_specs=[tile_spec, tile_spec],
            out_specs=pl.BlockSpec((8, _LANES), lambda i: (i, 0)),
        ),
        compiler_params=pltpu.CompilerParams(
            dimension_semantics=("parallel",)),
    )(x2, y2)

    # Each grid step broadcast its (1, 128) per-lane partials across 8 sublanes;
    # take one representative row per block and finish the reduction in XLA.
    total = jnp.sum(out[0::8, :])
    if reduction == "mean":
        return total / jnp.float32(n)
    elif reduction == "sum":
        return total
    raise ValueError(f"unknown reduction: {reduction}")


def _soft_margin_ref(x, y, reduction="mean"):
    """float64 numpy reference."""
    x = np.asarray(x, dtype=np.float64)
    y = np.asarray(y, dtype=np.float64)
    loss = np.log1p(np.exp(-y * x))
    if reduction == "mean":
        return loss.mean()
    if reduction == "sum":
        return loss.sum()
    return loss


if __name__ == "__main__":
    key = jax.random.PRNGKey(0)
    k1, k2 = jax.random.split(key)

    # Input: (*) any shape; Target: same shape, values in {-1, +1}.
    shape = (2, 4, 16, 16)
    x = jax.random.normal(k1, shape, dtype=jnp.float32) * 2.0
    y = jnp.where(jax.random.bernoulli(k2, 0.5, shape), 1.0, -1.0).astype(jnp.float32)

    # reduction='mean' (module default)
    loss_mean = jax.block_until_ready(soft_margin_loss_pallas(x, y, reduction="mean"))
    ref_mean = _soft_margin_ref(np.asarray(x), np.asarray(y), "mean")
    np.testing.assert_allclose(float(loss_mean), ref_mean, rtol=1e-5, atol=1e-6)

    # reduction='sum'
    loss_sum = jax.block_until_ready(soft_margin_loss_pallas(x, y, reduction="sum"))
    ref_sum = _soft_margin_ref(np.asarray(x), np.asarray(y), "sum")
    np.testing.assert_allclose(float(loss_sum), ref_sum, rtol=1e-5, atol=1e-4)

    # reduction='none'
    loss_none = jax.block_until_ready(soft_margin_loss_pallas(x, y, reduction="none"))
    ref_none = _soft_margin_ref(np.asarray(x), np.asarray(y), "none")
    np.testing.assert_allclose(np.asarray(loss_none), ref_none, rtol=1e-5, atol=1e-5)

    print("KERNEL_OK")
</pallas_src>

<mosaic_0001>
module attributes {stable_mosaic.version = 11 : i64} {
  func.func @_soft_margin_sum_kernel(%arg0: i32, %arg1: memref<16x128xf32, #tpu.memory_space<vmem>>, %arg2: memref<16x128xf32, #tpu.memory_space<vmem>>, %arg3: memref<8x128xf32, #tpu.memory_space<vmem>>) attributes {dimension_semantics = [#tpu.dimension_semantics<parallel>], iteration_bounds = array<i64: 1>, scalar_prefetch = 0 : i64, scratch_operands = 0 : i64, tpu.core_type = #tpu.core_type<tc>, window_params = [{transform_indices = @transform_0, window_bounds = array<i64: 16, 128>}, {transform_indices = @transform_1, window_bounds = array<i64: 16, 128>}, {transform_indices = @transform_2, window_bounds = array<i64: 8, 128>}]} {
    %c0 = arith.constant 0 : index
    %c0_0 = arith.constant 0 : index
    %0 = vector.load %arg1[%c0, %c0_0] : memref<16x128xf32, #tpu.memory_space<vmem>>, vector<16x128xf32>
    %c0_1 = arith.constant 0 : index
    %c0_2 = arith.constant 0 : index
    %1 = vector.load %arg2[%c0_1, %c0_2] : memref<16x128xf32, #tpu.memory_space<vmem>>, vector<16x128xf32>
    %cst = arith.constant 0.000000e+00 : f32
    %2 = vector.broadcast %cst : f32 to vector<16x128xf32>
    %3 = arith.subf %2, %1 : vector<16x128xf32>
    %4 = arith.mulf %3, %0 : vector<16x128xf32>
    %cst_3 = arith.constant 0.000000e+00 : f32
    %5 = vector.broadcast %cst_3 : f32 to vector<16x128xf32>
    %6 = arith.maximumf %4, %5 : vector<16x128xf32>
    %7 = math.absf %4 : vector<16x128xf32>
    %cst_4 = arith.constant 0.000000e+00 : f32
    %8 = vector.broadcast %cst_4 : f32 to vector<16x128xf32>
    %9 = arith.subf %8, %7 : vector<16x128xf32>
    %10 = math.exp %9 : vector<16x128xf32>
    %cst_5 = arith.constant 1.000000e+00 : f32
    %11 = vector.broadcast %cst_5 : f32 to vector<16x128xf32>
    %12 = arith.addf %11, %10 : vector<16x128xf32>
    %13 = math.log %12 : vector<16x128xf32>
    %14 = arith.addf %6, %13 : vector<16x128xf32>
    %15 = tpu.iota {dimensions = array<i32: 0>} : vector<16x128xi32>
    %16 = tpu.iota {dimensions = array<i32: 1>} : vector<16x128xi32>
    %c16_i32 = arith.constant 16 : i32
    %17 = arith.muli %arg0, %c16_i32 : i32
    %18 = vector.broadcast %17 : i32 to vector<16x128xi32>
    %19 = arith.addi %18, %15 : vector<16x128xi32>
    %c128_i32 = arith.constant 128 : i32
    %20 = vector.broadcast %c128_i32 : i32 to vector<16x128xi32>
    %21 = arith.muli %19, %20 : vector<16x128xi32>
    %22 = arith.addi %21, %16 : vector<16x128xi32>
    %c2048_i32 = arith.constant 2048 : i32
    %23 = vector.broadcast %c2048_i32 : i32 to vector<16x128xi32>
    %24 = arith.cmpi slt, %22, %23 : vector<16x128xi32>
    %cst_6 = arith.constant 0.000000e+00 : f32
    %25 = vector.broadcast %cst_6 : f32 to vector<16x128xf32>
    %26 = arith.select %24, %14, %25 : vector<16x128xi1>, vector<16x128xf32>
    %cst_7 = arith.constant dense<0.000000e+00> : vector<128xf32>
    %27 = vector.multi_reduction <add>, %26, %cst_7 [0] : vector<16x128xf32> to vector<128xf32>
    %28 = vector.shape_cast %27 : vector<128xf32> to vector<1x128xf32>
    %29 = vector.shape_cast %28 : vector<1x128xf32> to vector<1x128xf32>
    %30 = vector.broadcast %29 : vector<1x128xf32> to vector<8x128xf32>
    %c0_8 = arith.constant 0 : index
    %c0_9 = arith.constant 0 : index
    %31 = vector.load %arg3[%c0_8, %c0_9] : memref<8x128xf32, #tpu.memory_space<vmem>>, vector<8x128xf32>
    tpu.vector_store %arg3[%c0_8, %c0_9], %30 {strides = array<i32>} : memref<8x128xf32, #tpu.memory_space<vmem>>, vector<8x128xf32>,
    return
  }
  func.func @transform_0(%arg0: i32) -> (i32, i32) {
    %c0_i32 = arith.constant 0 : i32
    %c0_i32_0 = arith.constant 0 : i32
    return %arg0, %c0_i32 : i32, i32
  }
  func.func @transform_1(%arg0: i32) -> (i32, i32) {
    %c0_i32 = arith.constant 0 : i32
    %c0_i32_0 = arith.constant 0 : i32
    return %arg0, %c0_i32 : i32, i32
  }
  func.func @transform_2(%arg0: i32) -> (i32, i32) {
    %c0_i32 = arith.constant 0 : i32
    %c0_i32_0 = arith.constant 0 : i32
    return %arg0, %c0_i32 : i32, i32
  }
}

</mosaic_0001>

<llo_original>
// kernel: tpu_custom_call.1
$region0: #{tpu_custom_call.1}
  #allocation0 [shape = 'u32[]', space=smem, size = 0x4, offset = 0x4, fixed_abs, tag = 'smem constant byte address 0x4 - core index']
  #allocation1 [shape = 'u32[144,128]{1,0:T(1,128)}', space=vmem, size = 0x12000, scoped, tag = 'internal scratch']
  %s0 = inlined_call_operand.hbm [shape: f32[16,128], index: 0, kind: input, shape index: {}]
  %s1 = inlined_call_operand.hbm [shape: f32[16,128], index: 1, kind: input, shape index: {}]
  %s2 = inlined_call_operand.hbm [shape: f32[8,128], index: 2, kind: output, shape index: {}]
  %s3 = sld [smem:[#allocation0]]
  $region26: #{tpu_custom_call.1} parent=0
    _
  %s5 = ssub.s32 1, %s3
  %s6 = scalar_select 0, %s5, %s3
  $region1: #{tpu_custom_call.1} parent=0
    #allocation2 [shape = 'u8[8192]{0}', space=vmem, size = 0x2000, scoped, tag = 'input window, operand 0, single buffered']
    #allocation3 [shape = 's32[1]{0}', space=sflag, size = 0x4, scoped, tag = 'scoped memory for tpu_custom_call.1']
    #allocation4 [shape = 's32[1]{0}', space=sflag, size = 0x4, scoped, tag = 'scoped memory for tpu_custom_call.1']
    #allocation5 [shape = 'u8[8192]{0}', space=vmem, size = 0x2000, scoped, tag = 'input window, operand 1, single buffered']
    #allocation6 [shape = 's32[1]{0}', space=sflag, size = 0x4, scoped, tag = 'scoped memory for tpu_custom_call.1']
    #allocation7 [shape = 'u8[4096]{0}', space=vmem, size = 0x1000, scoped, tag = 'output window, operand 0, single buffered']
    %7 = vsyncpa [#allocation3], 0
    %8 = vsyncpa [#allocation6], 0
    %9 = vsyncpa [#allocation4], 0
    // Predicated region
    $region2: #{tpu_custom_call.1} parent=1 // pred_check
      _
    $region3: #{tpu_custom_call.1} parent=1 // pred_check_branch
      %11 = sbr.rel (0) target = $region5
    $region4: #{tpu_custom_call.1} parent=1 // pred_region
      %s13 = ssub.s32 256, 256
      %14 = vsyncadd [#allocation3], %s13
      %s15 = sshll.u32 [#allocation2], 4
      %s16 = int_to_ptr.vmem [resolvable:$true] %s15
      %21 = dma.hbm_to_vmem [thread:$0]  %s0, 256, %s16, [#allocation3], 128, 128, 8
    $region5: #{tpu_custom_call.1} parent=1 // pred_fallthru
      _
    // Predicated region
    $region6: #{tpu_custom_call.1} parent=1 // pred_check
      _
    $region7: #{tpu_custom_call.1} parent=1 // pred_check_branch
      %23 = sbr.rel (0) target = $region9
    $region8: #{tpu_custom_call.1} parent=1 // pred_region
      %s25 = ssub.s32 256, 256
      %26 = vsyncadd [#allocation6], %s25
      %s27 = sshll.u32 [#allocation5], 4
      %s28 = int_to_ptr.vmem [resolvable:$true] %s27
      %33 = dma.hbm_to_vmem [thread:$0]  %s1, 256, %s28, [#allocation6], 128, 128, 8
    $region9: #{tpu_custom_call.1} parent=1 // pred_fallthru
      _
    // Predicated region
    $region10: #{tpu_custom_call.1} parent=1 // pred_check
      _
    $region11: #{tpu_custom_call.1} parent=1 // pred_check_branch
      %35 = sbr.rel (0) target = $region13
    $region12: #{tpu_custom_call.1} parent=1 // pred_region
      %36 = dma.done [#allocation3], 256
    $region13: #{tpu_custom_call.1} parent=1 // pred_fallthru
      _
    // Predicated region
    $region14: #{tpu_custom_call.1} parent=1 // pred_check
      _
    $region15: #{tpu_custom_call.1} parent=1 // pred_check_branch
      %38 = sbr.rel (0) target = $region17
    $region16: #{tpu_custom_call.1} parent=1 // pred_region
      %39 = dma.done [#allocation6], 256
    $region17: #{tpu_custom_call.1} parent=1 // pred_fallthru
      _
    %v40 = vld [vmem:[#allocation2] sm:$0xff]
    %v41 = vld [vmem:[#allocation2 + $0x8] sm:$0xff]
    %v42 = vld [vmem:[#allocation5] sm:$0xff]
    %v43 = vld [vmem:[#allocation5 + $0x8] sm:$0xff]
    %v44 = vsub.f32 0.0, %v42
    %v45 = vsub.f32 0.0, %v43
    %v46 = vmul.f32 %v44, %v40
    %v47 = vmul.f32 %v45, %v41
    %v48 = vmax.f32 %v46, 0.0
    %v49 = vmax.f32 %v47, 0.0
    %v50 = vand.u32 2147483647, %v46
    %v51 = vand.u32 2147483647, %v47
    %v52 = vsub.f32 0.0, %v50
    %v53 = vsub.f32 0.0, %v51
    %v54 = vmul.f32 %v52, 1.442695
    %v55 = vpow.pop %v54
    %v56 = vmul.f32 %v53, 1.442695
    %v57 = vpow.pop %v56
    %v58 = vadd.f32 %v55, 1.0
    %v59 = vadd.f32 %v57, 1.0
    %v60 = vlog2.pop %v58
    %v61 = vmul.f32 %v60, 0.6931472
    %v62 = vlog2.pop %v59
    %v63 = vmul.f32 %v62, 0.6931472
    %v64 = vadd.f32 %v48, %v61
    %v65 = vadd.f32 %v49, %v63
    %v66 = vlaneseq
    %v67 = vshrl.u32 %v66, 7
    %v68 = vadd.s32 %v67, 8
    %v69 = vlaneseq
    %v70 = vand.u32 %v69, 127
    %s71 = smul.u32 0, 16
    %v72 = vstv %s71
    %v73 = vadd.s32 %v72, %v67
    %v74 = vadd.s32 %v72, %v68
    %v75 = vmul.u32 %v73, 128
    %v76 = vmul.u32 %v74, 128
    %v77 = vadd.s32 %v75, %v70
    %v78 = vadd.s32 %v76, %v70
    %vm79 = vcmp.lt.s32.totalorder %v77, 2048
    %vm80 = vcmp.lt.s32.totalorder %v78, 2048
    %v81 = vsel %vm79, %v64, 0.0
    %v82 = vsel %vm80, %v65, 0.0
    %v83 = vadd.f32 %v81, %v82
    %v84 = vrot.slane %v83, 4
    %v85 = vadd.f32 %v83, %v84
    %v86 = vrot.slane %v85, 2
    %v87 = vadd.f32 %v85, %v86
    %v88 = vrot.slane %v87, 1
    %v89 = vadd.f32 %v87, %v88
    %90 = vst [vmem:[#allocation7] sm:$0xff] %v89
    // Predicated region
    $region18: #{tpu_custom_call.1} parent=1 // pred_check
      _
    $region19: #{tpu_custom_call.1} parent=1 // pred_check_branch
      %92 = sbr.rel (0) target = $region21
    $region20: #{tpu_custom_call.1} parent=1 // pred_region
      %s94 = ssub.s32 128, 128
      %95 = vsyncadd [#allocation4], %s94
      %s97 = sshll.u32 [#allocation7], 4
      %s98 = int_to_ptr.vmem [resolvable:$true] %s97
      %100 = dma.vmem_to_hbm [thread:$0]  %s98, 128, %s2, [#allocation4]
    $region21: #{tpu_custom_call.1} parent=1 // pred_fallthru
      _
    // Predicated region
    $region22: #{tpu_custom_call.1} parent=1 // pred_check
      _
    $region23: #{tpu_custom_call.1} parent=1 // pred_check_branch
      %102 = sbr.rel (0) target = $region25
    $region24: #{tpu_custom_call.1} parent=1 // pred_region
      %103 = dma.done [#allocation4], 128
    $region25: #{tpu_custom_call.1} parent=1 // pred_fallthru
      _
    %104 = vsyncpa [#allocation3], 1
    %105 = vsyncpa [#allocation6], 1
    %106 = vsyncpa [#allocation4], 1

</llo_original>
